<compile_context>
chip_gen: v5e
topology: v5e:2x2
jax: 0.10.0
libtpu: 0.0.40
codegen_flags: <defaults>
</compile_context>

<pallas_src>
import functools
import math

import jax
import jax.numpy as jnp
import numpy as np
from jax.experimental import pallas as pl
from jax.experimental.pallas import tpu as pltpu


VMEM_LIMIT = 32 * 1024 * 1024   # >= default scoped VMEM on all gens, < v7x physical.


def _fit(dim, pref, align=128):
    """Largest tile <= pref that divides dim and is a multiple of `align`.

    Falls back to the full dim only when no aligned divisor exists (avoids the
    old full-extent fallback that blew the scoped-VMEM budget on real shapes).
    """
    if dim <= pref:
        return dim
    if dim % pref == 0:
        return pref
    t = (pref // align) * align
    while t >= align:
        if dim % t == 0:
            return t
        t -= align
    return dim


_MM_PARAMS = pltpu.CompilerParams(
    dimension_semantics=("parallel", "parallel", "arbitrary"),
    vmem_limit_bytes=VMEM_LIMIT)


# ----------------------------- RMS scale kernel ------------------------------

def _rms_scale_kernel(x_ref, o_ref, *, eps):
    x = x_ref[...].astype(jnp.float32)
    o_ref[...] = jax.lax.rsqrt(jnp.mean(x * x, axis=-1, keepdims=True) + eps)


def rms_scale(x, eps, *, tm=128):
    """Per-row rsqrt(mean(x^2)+eps) -> (M, 1) f32 (fused into matmul prologues)."""
    M, H = x.shape
    tm = _fit(M, tm, align=8)
    return pl.pallas_call(
        functools.partial(_rms_scale_kernel, eps=eps),
        out_shape=jax.ShapeDtypeStruct((M, 1), jnp.float32),
        grid=(M // tm,),
        in_specs=[pl.BlockSpec((tm, H), lambda i: (i, 0))],
        out_specs=pl.BlockSpec((tm, 1), lambda i: (i, 0)),
        compiler_params=pltpu.CompilerParams(
            dimension_semantics=("parallel",), vmem_limit_bytes=VMEM_LIMIT),
    )(x)


# ------------------------- RMSNorm + linear (fused) --------------------------

def _norm_linear_kernel(x_ref, rstd_ref, g_ref, w_ref, o_ref, acc_ref):
    @pl.when(pl.program_id(2) == 0)
    def _():
        acc_ref[...] = jnp.zeros_like(acc_ref)

    xn = (x_ref[...].astype(jnp.float32) * rstd_ref[...]
          * g_ref[...].astype(jnp.float32)).astype(x_ref.dtype)
    acc_ref[...] += jnp.dot(xn, w_ref[...], preferred_element_type=jnp.float32)

    @pl.when(pl.program_id(2) == pl.num_programs(2) - 1)
    def _():
        o_ref[...] = acc_ref[...].astype(o_ref.dtype)


def norm_linear(x, rstd, gamma, w, *, tm=512, tn=512, tk=512):
    """(rmsnorm(x) @ w) with w already in (K, N) layout."""
    M, K = x.shape
    _, N = w.shape
    tm, tn, tk = _fit(M, tm, 8), _fit(N, tn, 128), _fit(K, tk, 128)
    return pl.pallas_call(
        _norm_linear_kernel,
        out_shape=jax.ShapeDtypeStruct((M, N), x.dtype),
        grid=(M // tm, N // tn, K // tk),
        in_specs=[
            pl.BlockSpec((tm, tk), lambda i, j, k: (i, k)),
            pl.BlockSpec((tm, 1), lambda i, j, k: (i, 0)),
            pl.BlockSpec((1, tk), lambda i, j, k: (0, k)),
            pl.BlockSpec((tk, tn), lambda i, j, k: (k, j)),
        ],
        out_specs=pl.BlockSpec((tm, tn), lambda i, j, k: (i, j)),
        scratch_shapes=[pltpu.VMEM((tm, tn), jnp.float32)],
        compiler_params=_MM_PARAMS,
    )(x, rstd, gamma, w)


# -------------------------- linear + residual (fused) -------------------------

def _linear_residual_kernel(x_ref, w_ref, r_ref, o_ref, acc_ref):
    @pl.when(pl.program_id(2) == 0)
    def _():
        acc_ref[...] = jnp.zeros_like(acc_ref)

    acc_ref[...] += jnp.dot(x_ref[...], w_ref[...],
                            preferred_element_type=jnp.float32)

    @pl.when(pl.program_id(2) == pl.num_programs(2) - 1)
    def _():
        o_ref[...] = (acc_ref[...] + r_ref[...].astype(jnp.float32)
                      ).astype(o_ref.dtype)


def linear_residual(x, w, res, *, tm=512, tn=512, tk=512):
    """x @ w + res, with w in (K, N) layout."""
    M, K = x.shape
    _, N = w.shape
    tm, tn, tk = _fit(M, tm, 8), _fit(N, tn, 128), _fit(K, tk, 128)
    return pl.pallas_call(
        _linear_residual_kernel,
        out_shape=jax.ShapeDtypeStruct((M, N), x.dtype),
        grid=(M // tm, N // tn, K // tk),
        in_specs=[
            pl.BlockSpec((tm, tk), lambda i, j, k: (i, k)),
            pl.BlockSpec((tk, tn), lambda i, j, k: (k, j)),
            pl.BlockSpec((tm, tn), lambda i, j, k: (i, j)),
        ],
        out_specs=pl.BlockSpec((tm, tn), lambda i, j, k: (i, j)),
        scratch_shapes=[pltpu.VMEM((tm, tn), jnp.float32)],
        compiler_params=_MM_PARAMS,
    )(x, w, res)


# ------------------- RMSNorm + gate/up + SiLU*up (fused MLP) ------------------

def _norm_gate_up_kernel(x_ref, rstd_ref, g_ref, wg_ref, wu_ref, o_ref,
                         accg_ref, accu_ref):
    @pl.when(pl.program_id(2) == 0)
    def _():
        accg_ref[...] = jnp.zeros_like(accg_ref)
        accu_ref[...] = jnp.zeros_like(accu_ref)

    xn = (x_ref[...].astype(jnp.float32) * rstd_ref[...]
          * g_ref[...].astype(jnp.float32)).astype(x_ref.dtype)
    accg_ref[...] += jnp.dot(xn, wg_ref[...], preferred_element_type=jnp.float32)
    accu_ref[...] += jnp.dot(xn, wu_ref[...], preferred_element_type=jnp.float32)

    @pl.when(pl.program_id(2) == pl.num_programs(2) - 1)
    def _():
        gate = accg_ref[...]
        o_ref[...] = (gate * jax.nn.sigmoid(gate) * accu_ref[...]
                      ).astype(o_ref.dtype)


def norm_gate_up(x, rstd, gamma, wg, wu, *, tm=512, tn=512, tk=512):
    """silu(rmsnorm(x) @ wg) * (rmsnorm(x) @ wu); wg/wu in (K, N) layout."""
    M, K = x.shape
    _, N = wg.shape
    tm, tn, tk = _fit(M, tm, 8), _fit(N, tn, 128), _fit(K, tk, 128)
    return pl.pallas_call(
        _norm_gate_up_kernel,
        out_shape=jax.ShapeDtypeStruct((M, N), x.dtype),
        grid=(M // tm, N // tn, K // tk),
        in_specs=[
            pl.BlockSpec((tm, tk), lambda i, j, k: (i, k)),
            pl.BlockSpec((tm, 1), lambda i, j, k: (i, 0)),
            pl.BlockSpec((1, tk), lambda i, j, k: (0, k)),
            pl.BlockSpec((tk, tn), lambda i, j, k: (k, j)),
            pl.BlockSpec((tk, tn), lambda i, j, k: (k, j)),
        ],
        out_specs=pl.BlockSpec((tm, tn), lambda i, j, k: (i, j)),
        scratch_shapes=[pltpu.VMEM((tm, tn), jnp.float32),
                        pltpu.VMEM((tm, tn), jnp.float32)],
        compiler_params=_MM_PARAMS,
    )(x, rstd, gamma, wg, wu)


# ------------------------- per-head RoPE (pre-applied) ------------------------

def _rope_kernel(x_ref, cos_ref, sin_ref, o_ref, *, scale):
    # sin_ref already carries the rotate_half sign: [-sin, +sin], so
    # rotate_half(x)*sin == roll(x, D/2)*sin_signed (XLU roll, no concat copy).
    x = x_ref[...].astype(jnp.float32)
    rolled = pltpu.roll(x, x.shape[-1] // 2, 1)
    out = (x * cos_ref[...].astype(jnp.float32)
           + rolled * sin_ref[...].astype(jnp.float32)) * scale
    o_ref[...] = out.astype(o_ref.dtype)


def rope_heads(qkv, cos, sin_signed, *, n_heads, head_dim, col_offset, scale,
               out_dtype, tm=256):
    """Apply RoPE (and optional scale) to `n_heads` head-columns of qkv.

    Reads head h from qkv column block (col_offset + h); writes an
    (M, n_heads*head_dim) array.  cos/sin_signed are (M, head_dim).
    """
    M = qkv.shape[0]
    tm = _fit(M, tm, align=8)
    return pl.pallas_call(
        functools.partial(_rope_kernel, scale=scale),
        out_shape=jax.ShapeDtypeStruct((M, n_heads * head_dim), out_dtype),
        grid=(M // tm, n_heads),
        in_specs=[
            pl.BlockSpec((tm, head_dim), lambda i, h, off=col_offset: (i, off + h)),
            pl.BlockSpec((tm, head_dim), lambda i, h: (i, 0)),
            pl.BlockSpec((tm, head_dim), lambda i, h: (i, 0)),
        ],
        out_specs=pl.BlockSpec((tm, head_dim), lambda i, h: (i, h)),
        compiler_params=pltpu.CompilerParams(
            dimension_semantics=("parallel", "parallel"),
            vmem_limit_bytes=VMEM_LIMIT),
    )(qkv, cos, sin_signed)


# ------------- GQA-packed flash attention (causal, online softmax) ------------

def _flash_attn_kernel(q_ref, k_ref, v_ref, o_ref, q2_ref, m_ref, l_ref,
                       acc_ref, *, n_rep, tq, tk, head_dim, mask_value):
    i = pl.program_id(2)
    j = pl.program_id(3)

    @pl.when(j == 0)
    def _():
        # Pack the n_rep query heads sharing this KV head into a tall
        # (n_rep*tq, D) LHS once per q-tile (rows grouped by head).
        for h in range(n_rep):
            q2_ref[h * tq:(h + 1) * tq, :] = q_ref[:, h * head_dim:(h + 1) * head_dim]
        m_ref[...] = jnp.full_like(m_ref, -jnp.inf)
        l_ref[...] = jnp.zeros_like(l_ref)
        acc_ref[...] = jnp.zeros_like(acc_ref)

    # Skip KV tiles that are fully masked by causality.
    @pl.when(j * tk <= i * tq + tq - 1)
    def _():
        # QK^T in the input dtype (bf16 in production) with fp32 accumulation.
        s = jax.lax.dot_general(q2_ref[...], k_ref[...],
                                (((1,), (1,)), ((), ())),
                                preferred_element_type=jnp.float32)  # (n_rep*tq, tk)

        # Causal mask generated in-kernel from iota (no HBM bias stream).
        rows = jax.lax.broadcasted_iota(jnp.int32, s.shape, 0)
        cols = jax.lax.broadcasted_iota(jnp.int32, s.shape, 1)
        if tq & (tq - 1) == 0:
            row_in_tile = jnp.bitwise_and(rows, tq - 1)
        else:
            row_in_tile = jax.lax.rem(rows, tq)
        q_pos = i * tq + row_in_tile
        k_pos = j * tk + cols
        s = jnp.where(q_pos >= k_pos, s, mask_value)

        m_prev = m_ref[...]
        m_new = jnp.maximum(m_prev, jnp.max(s, axis=-1, keepdims=True))
        alpha = jnp.exp(m_prev - m_new)
        p = jnp.exp(s - m_new)
        l_ref[...] = alpha * l_ref[...] + jnp.sum(p, axis=-1, keepdims=True)
        acc_ref[...] = alpha * acc_ref[...] + jnp.dot(
            p.astype(v_ref.dtype), v_ref[...], preferred_element_type=jnp.float32)
        m_ref[...] = m_new

    @pl.when(j == pl.num_programs(3) - 1)
    def _():
        inv_l = pl.reciprocal(l_ref[...], approx=False)
        out = acc_ref[...] * inv_l
        for h in range(n_rep):
            o_ref[:, h * head_dim:(h + 1) * head_dim] = (
                out[h * tq:(h + 1) * tq, :].astype(o_ref.dtype))


def flash_attention(q_rot, k_rot, qkv, *, batch, seq, num_heads, num_kv_heads,
                    head_dim, v_col_offset, out_dtype, tq=256, tk=256):
    """GQA-packed causal flash attention.

    q_rot: (M, nH*D) pre-rotated+scaled queries; k_rot: (M, nKV*D) pre-rotated
    keys; qkv: fused projection output whose V region starts at column block
    `v_col_offset` (in units of head_dim).  Output: (M, nH*D).
    """
    M = batch * seq
    n_rep = num_heads // num_kv_heads
    tq = _fit(seq, tq, align=8)
    tk = _fit(seq, tk, align=8)
    nqt, nkt = seq // tq, seq // tk
    grid = (batch, num_kv_heads, nqt, nkt)

    q_spec = pl.BlockSpec((tq, n_rep * head_dim),
                          lambda b, g, i, j, nqt=nqt: (b * nqt + i, g))
    k_spec = pl.BlockSpec((tk, head_dim),
                          lambda b, g, i, j, nkt=nkt: (b * nkt + j, g))
    v_spec = pl.BlockSpec((tk, head_dim),
                          lambda b, g, i, j, nkt=nkt, off=v_col_offset:
                          (b * nkt + j, off + g))
    o_spec = pl.BlockSpec((tq, n_rep * head_dim),
                          lambda b, g, i, j, nqt=nqt: (b * nqt + i, g))

    return pl.pallas_call(
        functools.partial(_flash_attn_kernel, n_rep=n_rep, tq=tq, tk=tk,
                          head_dim=head_dim, mask_value=-1e30),
        out_shape=jax.ShapeDtypeStruct((M, num_heads * head_dim), out_dtype),
        grid=grid,
        in_specs=[q_spec, k_spec, v_spec],
        out_specs=o_spec,
        scratch_shapes=[
            pltpu.VMEM((n_rep * tq, head_dim), q_rot.dtype),  # packed Q
            pltpu.VMEM((n_rep * tq, 1), jnp.float32),         # running max
            pltpu.VMEM((n_rep * tq, 1), jnp.float32),         # running denom
            pltpu.VMEM((n_rep * tq, head_dim), jnp.float32),  # output accum
        ],
        compiler_params=pltpu.CompilerParams(
            dimension_semantics=("parallel", "parallel", "parallel", "arbitrary"),
            vmem_limit_bytes=VMEM_LIMIT),
    )(q_rot, k_rot, qkv)


# ---------------------- one-time weight layout preparation --------------------

def prepare_params(params):
    """Init-time layout prep: nn.Linear (out,in) -> (in,out) and fuse QKV.

    Called ONCE; the forward path never transposes weights.
    TODO(synk): v7x fp8 weight storage / dequant epilogue not implemented.
    """
    wq = params["q_proj"].T
    wk = params["k_proj"].T
    wv = params["v_proj"].T
    return {
        "wqkv": jnp.concatenate([wq, wk, wv], axis=1),   # (H, (nH+2*nKV)*D)
        "wo": params["o_proj"].T,                        # (nH*D, H)
        "wg": params["gate_proj"].T,                     # (H, I)
        "wu": params["up_proj"].T,                       # (H, I)
        "wd": params["down_proj"].T,                     # (I, H)
        "g_in": params["input_ln"].reshape(1, -1),
        "g_post": params["post_ln"].reshape(1, -1),
    }


# ------------------------ decoder layer (Pallas path) -------------------------

def llama_decoder_layer(prepared, hidden_states, position_ids, cos_cached,
                        sin_cached, cfg):
    # TODO(synk): arbitrary/padding additive attention masks are not supported;
    # the standard causal mask is generated inside the flash-attention kernel.
    B, S, H = hidden_states.shape
    nH, nKV, D = cfg["num_heads"], cfg["num_kv_heads"], cfg["head_dim"]
    eps = cfg["eps"]
    M = B * S
    dtype = hidden_states.dtype

    x = hidden_states.reshape(M, H)

    # Rotary tables gathered per position (tiny M x D); fold the rotate_half
    # sign into sin so the RoPE kernel can use pltpu.roll.
    cos = cos_cached[position_ids].reshape(M, D).astype(dtype)
    sin = sin_cached[position_ids].reshape(M, D).astype(dtype)
    sign = jnp.concatenate([jnp.full((D // 2,), -1.0, dtype=dtype),
                            jnp.ones((D // 2,), dtype=dtype)])
    sin_s = sin * sign

    # ---- attention block ----
    rstd1 = rms_scale(x, eps)                                     # (M, 1) f32
    qkv = norm_linear(x, rstd1, prepared["g_in"], prepared["wqkv"])
    # qkv columns (in units of D): [0,nH) = Q heads, [nH,nH+nKV) = K heads,
    # [nH+nKV, nH+2*nKV) = V heads.

    scale = 1.0 / math.sqrt(D)
    q_rot = rope_heads(qkv, cos, sin_s, n_heads=nH, head_dim=D,
                       col_offset=0, scale=scale, out_dtype=dtype)
    k_rot = rope_heads(qkv, cos, sin_s, n_heads=nKV, head_dim=D,
                       col_offset=nH, scale=1.0, out_dtype=dtype)

    attn = flash_attention(q_rot, k_rot, qkv, batch=B, seq=S, num_heads=nH,
                           num_kv_heads=nKV, head_dim=D,
                           v_col_offset=nH + nKV, out_dtype=dtype)  # (M, nH*D)

    h1 = linear_residual(attn, prepared["wo"], x)                 # o_proj + res

    # ---- MLP block ----
    rstd2 = rms_scale(h1, eps)
    inter = norm_gate_up(h1, rstd2, prepared["g_post"],
                         prepared["wg"], prepared["wu"])          # silu(g)*u
    out = linear_residual(inter, prepared["wd"], h1)              # down + res

    return out.reshape(B, S, H)


# ---------------------------- pure-JAX reference ------------------------------

def reference_decoder_layer(params, hidden_states, attention_mask, position_ids,
                            cos_cached, sin_cached, cfg):
    B, S, H = hidden_states.shape
    nH, nKV, D = cfg["num_heads"], cfg["num_kv_heads"], cfg["head_dim"]
    eps = cfg["eps"]

    def rms(h, w):
        hf = h.astype(jnp.float32)
        var = jnp.mean(hf * hf, axis=-1, keepdims=True)
        return w * (hf * jax.lax.rsqrt(var + eps)).astype(h.dtype)

    def rot_half(x):
        d = x.shape[-1]
        return jnp.concatenate([-x[..., d // 2:], x[..., : d // 2]], axis=-1)

    residual = hidden_states
    h = rms(hidden_states, params["input_ln"])
    q = h @ params["q_proj"].T
    k = h @ params["k_proj"].T
    v = h @ params["v_proj"].T
    q = q.reshape(B, S, nH, D).transpose(0, 2, 1, 3)
    k = k.reshape(B, S, nKV, D).transpose(0, 2, 1, 3)
    v = v.reshape(B, S, nKV, D).transpose(0, 2, 1, 3)
    cos = cos_cached[position_ids][:, None]
    sin = sin_cached[position_ids][:, None]
    q = q * cos + rot_half(q) * sin
    k = k * cos + rot_half(k) * sin
    n_rep = nH // nKV
    k = jnp.repeat(k, n_rep, axis=1)
    v = jnp.repeat(v, n_rep, axis=1)
    s = jnp.einsum("bhqd,bhkd->bhqk", q, k) / math.sqrt(D)
    s = s + attention_mask
    p = jax.nn.softmax(s.astype(jnp.float32), axis=-1).astype(q.dtype)
    o = jnp.einsum("bhqk,bhkd->bhqd", p, v)
    o = o.transpose(0, 2, 1, 3).reshape(B, S, H)
    o = o @ params["o_proj"].T
    h = residual + o
    residual = h
    hn = rms(h, params["post_ln"])
    g = hn @ params["gate_proj"].T
    u = hn @ params["up_proj"].T
    m = (jax.nn.silu(g) * u) @ params["down_proj"].T
    return residual + m


# ------------------------------------ main ------------------------------------

if __name__ == "__main__":
    B, S = 2, 128
    nH, nKV, D = 4, 2, 128          # head_dim = 128 (real Llama geometry), GQA
    H = nH * D                      # 512
    I = 1024                        # intermediate_size
    max_pos = 256
    eps = 1e-6
    cfg = dict(num_heads=nH, num_kv_heads=nKV, head_dim=D, eps=eps)

    key = jax.random.PRNGKey(0)
    keys = jax.random.split(key, 10)
    std = 0.02
    params = {
        "q_proj": std * jax.random.normal(keys[0], (nH * D, H), jnp.float32),
        "k_proj": std * jax.random.normal(keys[1], (nKV * D, H), jnp.float32),
        "v_proj": std * jax.random.normal(keys[2], (nKV * D, H), jnp.float32),
        "o_proj": std * jax.random.normal(keys[3], (H, nH * D), jnp.float32),
        "gate_proj": std * jax.random.normal(keys[4], (I, H), jnp.float32),
        "up_proj": std * jax.random.normal(keys[5], (I, H), jnp.float32),
        "down_proj": std * jax.random.normal(keys[6], (H, I), jnp.float32),
        "input_ln": 1.0 + 0.1 * jax.random.normal(keys[7], (H,), jnp.float32),
        "post_ln": 1.0 + 0.1 * jax.random.normal(keys[8], (H,), jnp.float32),
    }

    hidden_states = jax.random.normal(keys[9], (B, S, H), jnp.float32)
    position_ids = jnp.broadcast_to(jnp.arange(S, dtype=jnp.int32), (B, S))

    # causal additive attention mask (batch, 1, q_len, kv_len) for the reference
    causal = jnp.tril(jnp.ones((S, S), dtype=bool))
    attention_mask = jnp.where(causal, 0.0, -1e9).astype(jnp.float32)[None, None]
    attention_mask = jnp.broadcast_to(attention_mask, (B, 1, S, S))

    # rotary cos/sin cache (LlamaRotaryEmbedding, base=10000, no scaling)
    inv_freq = 1.0 / (10000.0 ** (jnp.arange(0, D, 2, dtype=jnp.float32) / D))
    t = jnp.arange(max_pos, dtype=jnp.float32)
    freqs = jnp.outer(t, inv_freq)
    emb = jnp.concatenate([freqs, freqs], axis=-1)
    cos_cached = jnp.cos(emb)       # (max_pos, D)
    sin_cached = jnp.sin(emb)

    # One-time (init-time) weight layout prep — outside the forward path.
    prepared = jax.tree_util.tree_map(jax.block_until_ready,
                                      prepare_params(params))

    out = llama_decoder_layer(prepared, hidden_states, position_ids,
                              cos_cached, sin_cached, cfg)
    out = jax.block_until_ready(out)

    ref = reference_decoder_layer(params, hidden_states, attention_mask,
                                  position_ids, cos_cached, sin_cached, cfg)
    ref = jax.block_until_ready(ref)

    assert out.shape == (B, S, H)
    np.testing.assert_allclose(np.asarray(out), np.asarray(ref),
                               rtol=2e-3, atol=2e-3)
    print("KERNEL_OK")
</pallas_src>

<mosaic_0001>
module attributes {stable_mosaic.version = 11 : i64} {
  func.func @_rms_scale_kernel(%arg0: i32, %arg1: memref<128x512xf32, #tpu.memory_space<vmem>>, %arg2: memref<128x1xf32, #tpu.memory_space<vmem>>) attributes {dimension_semantics = [#tpu.dimension_semantics<parallel>], iteration_bounds = array<i64: 2>, scalar_prefetch = 0 : i64, scratch_operands = 0 : i64, tpu.core_type = #tpu.core_type<tc>, window_params = [{transform_indices = @transform_0, window_bounds = array<i64: 128, 512>}, {transform_indices = @transform_1, window_bounds = array<i64: 128, 1>}]} {
    %c0 = arith.constant 0 : index
    %c0_0 = arith.constant 0 : index
    %0 = vector.load %arg1[%c0, %c0_0] : memref<128x512xf32, #tpu.memory_space<vmem>>, vector<128x512xf32>
    %1 = arith.mulf %0, %0 : vector<128x512xf32>
    %cst = arith.constant dense<0.000000e+00> : vector<128xf32>
    %2 = vector.multi_reduction <add>, %1, %cst [1] : vector<128x512xf32> to vector<128xf32>
    %3 = vector.shape_cast %2 : vector<128xf32> to vector<128x1xf32>
    %cst_1 = arith.constant 5.120000e+02 : f32
    %4 = vector.broadcast %cst_1 : f32 to vector<128x1xf32>
    %5 = arith.divf %3, %4 : vector<128x1xf32>
    %cst_2 = arith.constant 9.99999997E-7 : f32
    %6 = vector.broadcast %cst_2 : f32 to vector<128x1xf32>
    %7 = arith.addf %5, %6 : vector<128x1xf32>
    %8 = math.rsqrt %7 : vector<128x1xf32>
    %c0_3 = arith.constant 0 : index
    %c0_4 = arith.constant 0 : index
    %9 = vector.load %arg2[%c0_3, %c0_4] : memref<128x1xf32, #tpu.memory_space<vmem>>, vector<128x1xf32>
    tpu.vector_store %arg2[%c0_3, %c0_4], %8 {strides = array<i32>} : memref<128x1xf32, #tpu.memory_space<vmem>>, vector<128x1xf32>,
    return
  }
  func.func @transform_0(%arg0: i32) -> (i32, i32) {
    %c0_i32 = arith.constant 0 : i32
    %c0_i32_0 = arith.constant 0 : i32
    return %arg0, %c0_i32 : i32, i32
  }
  func.func @transform_1(%arg0: i32) -> (i32, i32) {
    %c0_i32 = arith.constant 0 : i32
    %c0_i32_0 = arith.constant 0 : i32
    return %arg0, %c0_i32 : i32, i32
  }
}

</mosaic_0001>

<llo_original>
// kernel: tpu_custom_call.1
$region0: #{tpu_custom_call.1}
  #allocation0 [shape = 'u32[]', space=smem, size = 0x4, offset = 0x4, fixed_abs, tag = 'smem constant byte address 0x4 - core index']
  #allocation1 [shape = 'u32[72,128]{1,0:T(1,128)}', space=vmem, size = 0x9000, scoped, tag = 'internal scratch']
  %s0 = inlined_call_operand.hbm [shape: f32[256,512], index: 0, kind: input, shape index: {}]
  %s1 = inlined_call_operand.vmem [shape: f32[256,1], index: 1, kind: output, shape index: {}]
  %s2 = sld [smem:[#allocation0]]
  $region41: #{tpu_custom_call.1} parent=0
    _
  %s4 = ssub.s32 1, %s2
  %s5 = scalar_select 0, %s4, %s2
  $region1: #{tpu_custom_call.1} parent=0
    #allocation2 [shape = 'u8[524288]{0}', space=vmem, size = 0x80000, scoped, tag = 'input window, operand 0']
    #allocation3 [shape = 's32[2]{0}', space=sflag, size = 0x8, scoped, tag = 'scoped memory for tpu_custom_call.1']
    %6 = vsyncpa [#allocation3], 0
    %s7 = scalar_lea.sflag [#allocation3], 1
    %8 = vsyncpa %s7, 0
    loop: start=0, step=1, limit=4
    $region2: #{tpu_custom_call.1} parent=1 // loop_pre_header
      _
    $region3: #{tpu_custom_call.1} parent=1 // loop_header
      %s10 = sphi 0, %s14
      %p11 = scmp.ge.s32.totalorder %s10, 4
      %s20 = sphi 0, %s22
      %s23 = sphi 0, %s20
      %s24 = sphi 0, %s23
      %s40 = sphi 0, %s24
      %s46 = sphi 0, %s48
      %s49 = sphi 0, %s46
      %s50 = sphi 0, %s49
      %s66 = sphi 0, %s50
    $region4: #{tpu_custom_call.1} parent=1 // loop_header_branch
      %13 = sbr.rel (%p11) target = $region8
    $region5: #{tpu_custom_call.1} parent=1 // loop_body
      %s15 = ssub.s32 %s10, 1
      %s16 = ssub.s32 %s10, 2
      %s17 = sadd.s32 %s10, 1
      %s18 = ssub.s32 %s10, %s17
      %p19 = scmp.eq.s32.totalorder %s18, 0
      %s21 = sadd.s32 %s20, 1
      %s22 = scalar_select %p19, %s20, %s21
      %p25 = pneg %p19
      %p26 = scmp.eq.s32.totalorder %s10, 1
      %p27 = por %p25, %p26
      %p28 = scmp.ne.s32.totalorder %s20, %s23
      %p29 = scmp.eq.s32.totalorder %s10, 0
      %p30 = por %p28, %p29
      %p31 = scmp.ne.s32.totalorder %s20, %s23
      %p32 = scmp.eq.s32.totalorder %s15, 1
      %p33 = por %p31, %p32
      %p34 = scmp.ne.s32.totalorder %s23, %s24
      %p35 = scmp.eq.s32.totalorder %s15, 0
      %p36 = por %p34, %p35
      %p37 = scmp.ne.s32.totalorder %s23, %s24
      %p38 = scmp.eq.s32.totalorder %s16, 1
      %p39 = por %p37, %p38
      %p41 = scmp.ne.s32.totalorder %s24, %s40
      %p42 = scmp.eq.s32.totalorder %s16, 0
      %p43 = por %p41, %p42
      %s44 = ssub.s32 %s10, %s17
      %p45 = scmp.eq.s32.totalorder %s44, 0
      %s47 = sadd.s32 %s46, 1
      %s48 = scalar_select %p45, %s46, %s47
      %p51 = pneg %p45
      %p52 = scmp.eq.s32.totalorder %s10, 1
      %p53 = por %p51, %p52
      %p54 = scmp.ne.s32.totalorder %s46, %s49
      %p55 = scmp.eq.s32.totalorder %s10, 0
      %p56 = por %p54, %p55
      %p57 = scmp.ne.s32.totalorder %s46, %s49
      %p58 = scmp.eq.s32.totalorder %s15, 1
      %p59 = por %p57, %p58
      %p60 = scmp.ne.s32.totalorder %s49, %s50
      %p61 = scmp.eq.s32.totalorder %s15, 0
      %p62 = por %p60, %p61
      %p63 = scmp.ne.s32.totalorder %s49, %s50
      %p64 = scmp.eq.s32.totalorder %s16, 1
      %p65 = por %p63, %p64
      %p67 = scmp.ne.s32.totalorder %s50, %s66
      %p68 = scmp.eq.s32.totalorder %s16, 0
      %p69 = por %p67, %p68
      %p70 = scmp.le.s32.totalorder 1, %s10
      %p71 = scmp.lt.s32.totalorder %s10, 3
      %p72 = pnand %p70, %p71
      %p73 = pneg %p72
      // Predicated region
      $region9: #{tpu_custom_call.1} parent=5 // pred_check
        _
      $region10: #{tpu_custom_call.1} parent=5 // pred_check_branch
        %75 = sbr.rel (%p72) target = $region12
      $region11: #{tpu_custom_call.1} parent=5 // pred_region
        %s76 = ssub.s32 %s10, 1
      $region12: #{tpu_custom_call.1} parent=5 // pred_fallthru
        _
      %p77 = scmp.lt.s32.totalorder %s10, 2
      // Predicated region
      $region13: #{tpu_custom_call.1} parent=5 // pred_check
        %p78 = pneg %p77
      $region14: #{tpu_custom_call.1} parent=5 // pred_check_branch
        %80 = sbr.rel (%p78) target = $region16
      $region15: #{tpu_custom_call.1} parent=5 // pred_region
        // Predicated region
        $region17: #{tpu_custom_call.1} parent=15 // pred_check
          %p81 = pneg %p30
        $region18: #{tpu_custom_call.1} parent=15 // pred_check_branch
          %83 = sbr.rel (%p81) target = $region20
        $region19: #{tpu_custom_call.1} parent=15 // pred_region
          %s84 = sand.u32 %s20, 1
          %s85 = scalar_lea.sflag [#allocation3], %s84
          %s86 = sand.u32 %s20, 1
          %s87 = smul.addr %s86, 512
          %s88 = scalar_lea.vmem [#allocation2], %s87
          %s89 = smul.u32 16, %s10
          %91 = vsyncadd %s85, 0
          %s92 = smul.addr %s89, 4
          %s93 = smul.addr %s92, 8
          %s94 = scalar_lea.hbm %s0, %s93
          %s95 = sshll.u32 %s94, 4
          %s96 = int_to_ptr.hbm [resolvable:$true] %s95
          %s97 = sshll.u32 %s88, 4
          %s98 = int_to_ptr.vmem [resolvable:$true] %s97
          %103 = dma.hbm_to_vmem [thread:$0]  %s96, 8192, %s98, %s85, 512, 512, 32
        $region20: #{tpu_custom_call.1} parent=15 // pred_fallthru
          _
      $region16: #{tpu_custom_call.1} parent=5 // pred_fallthru
        _
      %p104 = scmp.le.s32.totalorder 1, %s10
      %p105 = scmp.lt.s32.totalorder %s10, 3
      %p106 = pnand %p104, %p105
      %p107 = pneg %p106
      // Predicated region
      $region21: #{tpu_custom_call.1} parent=5 // pred_check
        _
      $region22: #{tpu_custom_call.1} parent=5 // pred_check_branch
        %109 = sbr.rel (%p106) target = $region24
      $region23: #{tpu_custom_call.1} parent=5 // pred_region
        %s110 = ssub.s32 %s10, 1
        %s111 = sand.u32 %s23, 1
        %s112 = scalar_lea.sflag [#allocation3], %s111
        %s113 = sand.u32 %s23, 1
        %s114 = smul.addr %s113, 512
        %s115 = scalar_lea.vmem [#allocation2], %s114
        // Predicated region
        $region25: #{tpu_custom_call.1} parent=23 // pred_check
          %p116 = pneg %p36
        $region26: #{tpu_custom_call.1} parent=23 // pred_check_branch
          %118 = sbr.rel (%p116) target = $region28
        $region27: #{tpu_custom_call.1} parent=23 // pred_region
          %120 = dma.done %s112, 8192
        $region28: #{tpu_custom_call.1} parent=23 // pred_fallthru
          _
        %s121 = sand.u32 %s23, 1
        %s122 = scalar_lea.sflag [#allocation3], %s121
        %s123 = sand.u32 %s23, 1
        %s124 = smul.addr %s123, 512
        %s125 = scalar_lea.vmem [#allocation2], %s124
        %p126 = pneg %p36
        %p127 = pneg %p33
        %p128 = pneg %p62
        %p129 = pneg %p59
        %s130 = smul.u32 16, %s15
        %p131 = scmp.lt.s32.totalorder %s130, 31
        %s132 = scalar_select %p131, %s130, 31
        %s133 = smul.addr %s132, 8
        %s134 = scalar_lea.vmem %s1, %s133
        %s135 = smul.u32 16, %s15
        %s136 = smul.u32 16, %s15
        %p137 = scmp.lt.s32.totalorder %s136, 31
        %s138 = scalar_select %p137, %s136, 31
        %s139 = smul.addr %s138, 8
        %s140 = scalar_lea.vmem %s1, %s139
        %s141 = smul.u32 16, %s15
        %v142 = vld [vmem:[%s115] sm:$0xff]
        %v143 = vld [vmem:[%s115 + $0x8] sm:$0xff]
        %v144 = vld [vmem:[%s115 + $0x10] sm:$0xff]
        %v145 = vld [vmem:[%s115 + $0x18] sm:$0xff]
        %v146 = vld [vmem:[%s115 + $0x20] sm:$0xff]
        %v147 = vld [vmem:[%s115 + $0x28] sm:$0xff]
        %v148 = vld [vmem:[%s115 + $0x30] sm:$0xff]
        %v149 = vld [vmem:[%s115 + $0x38] sm:$0xff]
        %v150 = vld [vmem:[%s115 + $0x40] sm:$0xff]
        %v151 = vld [vmem:[%s115 + $0x48] sm:$0xff]
        %v152 = vld [vmem:[%s115 + $0x50] sm:$0xff]
        %v153 = vld [vmem:[%s115 + $0x58] sm:$0xff]
        %v154 = vld [vmem:[%s115 + $0x60] sm:$0xff]
        %v155 = vld [vmem:[%s115 + $0x68] sm:$0xff]
        %v156 = vld [vmem:[%s115 + $0x70] sm:$0xff]
        %v157 = vld [vmem:[%s115 + $0x78] sm:$0xff]
        %v158 = vld [vmem:[%s115 + $0x80] sm:$0xff]
        %v159 = vld [vmem:[%s115 + $0x88] sm:$0xff]
        %v160 = vld [vmem:[%s115 + $0x90] sm:$0xff]
        %v161 = vld [vmem:[%s115 + $0x98] sm:$0xff]
        %v162 = vld [vmem:[%s115 + $0xa0] sm:$0xff]
        %v163 = vld [vmem:[%s115 + $0xa8] sm:$0xff]
        %v164 = vld [vmem:[%s115 + $0xb0] sm:$0xff]
        %v165 = vld [vmem:[%s115 + $0xb8] sm:$0xff]
        %v166 = vld [vmem:[%s115 + $0xc0] sm:$0xff]
        %v167 = vld [vmem:[%s115 + $0xc8] sm:$0xff]
        %v168 = vld [vmem:[%s115 + $0xd0] sm:$0xff]
        %v169 = vld [vmem:[%s115 + $0xd8] sm:$0xff]
        %v170 = vld [vmem:[%s115 + $0xe0] sm:$0xff]
        %v171 = vld [vmem:[%s115 + $0xe8] sm:$0xff]
        %v172 = vld [vmem:[%s115 + $0xf0] sm:$0xff]
        %v173 = vld [vmem:[%s115 + $0xf8] sm:$0xff]
        %v174 = vld [vmem:[%s115 + $0x100] sm:$0xff]
        %v175 = vld [vmem:[%s115 + $0x108] sm:$0xff]
        %v176 = vld [vmem:[%s115 + $0x110] sm:$0xff]
        %v177 = vld [vmem:[%s115 + $0x118] sm:$0xff]
        %v178 = vld [vmem:[%s115 + $0x120] sm:$0xff]
        %v179 = vld [vmem:[%s115 + $0x128] sm:$0xff]
        %v180 = vld [vmem:[%s115 + $0x130] sm:$0xff]
        %v181 = vld [vmem:[%s115 + $0x138] sm:$0xff]
        %v182 = vld [vmem:[%s115 + $0x140] sm:$0xff]
        %v183 = vld [vmem:[%s115 + $0x148] sm:$0xff]
        %v184 = vld [vmem:[%s115 + $0x150] sm:$0xff]
        %v185 = vld [vmem:[%s115 + $0x158] sm:$0xff]
        %v186 = vld [vmem:[%s115 + $0x160] sm:$0xff]
        %v187 = vld [vmem:[%s115 + $0x168] sm:$0xff]
        %v188 = vld [vmem:[%s115 + $0x170] sm:$0xff]
        %v189 = vld [vmem:[%s115 + $0x178] sm:$0xff]
        %v190 = vld [vmem:[%s115 + $0x180] sm:$0xff]
        %v191 = vld [vmem:[%s115 + $0x188] sm:$0xff]
        %v192 = vld [vmem:[%s115 + $0x190] sm:$0xff]
        %v193 = vld [vmem:[%s115 + $0x198] sm:$0xff]
        %v194 = vld [vmem:[%s115 + $0x1a0] sm:$0xff]
        %v195 = vld [vmem:[%s115 + $0x1a8] sm:$0xff]
        %v196 = vld [vmem:[%s115 + $0x1b0] sm:$0xff]
        %v197 = vld [vmem:[%s115 + $0x1b8] sm:$0xff]
        %v198 = vld [vmem:[%s115 + $0x1c0] sm:$0xff]
        %v199 = vld [vmem:[%s115 + $0x1c8] sm:$0xff]
        %v200 = vld [vmem:[%s115 + $0x1d0] sm:$0xff]
        %v201 = vld [vmem:[%s115 + $0x1d8] sm:$0xff]
        %v202 = vld [vmem:[%s115 + $0x1e0] sm:$0xff]
        %v203 = vld [vmem:[%s115 + $0x1e8] sm:$0xff]
        %v204 = vld [vmem:[%s115 + $0x1f0] sm:$0xff]
        %v205 = vld [vmem:[%s115 + $0x1f8] sm:$0xff]
        %v206 = vmul.f32 %v142, %v142
        %v207 = vmul.f32 %v143, %v143
        %v208 = vmul.f32 %v144, %v144
        %v209 = vmul.f32 %v145, %v145
        %v210 = vmul.f32 %v146, %v146
        %v211 = vmul.f32 %v147, %v147
        %v212 = vmul.f32 %v148, %v148
        %v213 = vmul.f32 %v149, %v149
        %v214 = vmul.f32 %v150, %v150
        %v215 = vmul.f32 %v151, %v151
        %v216 = vmul.f32 %v152, %v152
        %v217 = vmul.f32 %v153, %v153
        %v218 = vmul.f32 %v154, %v154
        %v219 = vmul.f32 %v155, %v155
        %v220 = vmul.f32 %v156, %v156
        %v221 = vmul.f32 %v157, %v157
        %v222 = vmul.f32 %v158, %v158
        %v223 = vmul.f32 %v159, %v159
        %v224 = vmul.f32 %v160, %v160
        %v225 = vmul.f32 %v161, %v161
        %v226 = vmul.f32 %v162, %v162
        %v227 = vmul.f32 %v163, %v163
        %v228 = vmul.f32 %v164, %v164
        %v229 = vmul.f32 %v165, %v165
        %v230 = vmul.f32 %v166, %v166
        %v231 = vmul.f32 %v167, %v167
        %v232 = vmul.f32 %v168, %v168
        %v233 = vmul.f32 %v169, %v169
        %v234 = vmul.f32 %v170, %v170
        %v235 = vmul.f32 %v171, %v171
        %v236 = vmul.f32 %v172, %v172
        %v237 = vmul.f32 %v173, %v173
        %v238 = vmul.f32 %v174, %v174
        %v239 = vmul.f32 %v175, %v175
        %v240 = vmul.f32 %v176, %v176
        %v241 = vmul.f32 %v177, %v177
        %v242 = vmul.f32 %v178, %v178
        %v243 = vmul.f32 %v179, %v179
        %v244 = vmul.f32 %v180, %v180
        %v245 = vmul.f32 %v181, %v181
        %v246 = vmul.f32 %v182, %v182
        %v247 = vmul.f32 %v183, %v183
        %v248 = vmul.f32 %v184, %v184
        %v249 = vmul.f32 %v185, %v185
        %v250 = vmul.f32 %v186, %v186
        %v251 = vmul.f32 %v187, %v187
        %v252 = vmul.f32 %v188, %v188
        %v253 = vmul.f32 %v189, %v189
        %v254 = vmul.f32 %v190, %v190
        %v255 = vmul.f32 %v191, %v191
        %v256 = vmul.f32 %v192, %v192
        %v257 = vmul.f32 %v193, %v193
        %v258 = vmul.f32 %v194, %v194
        %v259 = vmul.f32 %v195, %v195
        %v260 = vmul.f32 %v196, %v196
        %v261 = vmul.f32 %v197, %v197
        %v262 = vmul.f32 %v198, %v198
        %v263 = vmul.f32 %v199, %v199
        %v264 = vmul.f32 %v200, %v200
        %v265 = vmul.f32 %v201, %v201
        %v266 = vmul.f32 %v202, %v202
        %v267 = vmul.f32 %v203, %v203
        %v268 = vmul.f32 %v204, %v204
        %v269 = vmul.f32 %v205, %v205
        %v270 = vadd.f32 %v206, %v207
        %v271 = vadd.f32 %v270, %v208
        %v272 = vadd.f32 %v271, %v209
        %273 = vadd.xlane.f32.xlu0 %v272
        %v274 = vpop.xlane.xlu0 %273
        %v275 = vadd.f32 %v210, %v211
        %v276 = vadd.f32 %v275, %v212
        %v277 = vadd.f32 %v276, %v213
        %278 = vadd.xlane.f32.xlu0 %v277
        %v279 = vpop.xlane.xlu0 %278
        %v280 = vadd.f32 %v214, %v215
        %v281 = vadd.f32 %v280, %v216
        %v282 = vadd.f32 %v281, %v217
        %283 = vadd.xlane.f32.xlu0 %v282
        %v284 = vpop.xlane.xlu0 %283
        %v285 = vadd.f32 %v218, %v219
        %v286 = vadd.f32 %v285, %v220
        %v287 = vadd.f32 %v286, %v221
        %288 = vadd.xlane.f32.xlu0 %v287
        %v289 = vpop.xlane.xlu0 %288
        %v290 = vadd.f32 %v222, %v223
        %v291 = vadd.f32 %v290, %v224
        %v292 = vadd.f32 %v291, %v225
        %293 = vadd.xlane.f32.xlu0 %v292
        %v294 = vpop.xlane.xlu0 %293
        %v295 = vadd.f32 %v226, %v227
        %v296 = vadd.f32 %v295, %v228
        %v297 = vadd.f32 %v296, %v229
        %298 = vadd.xlane.f32.xlu0 %v297
        %v299 = vpop.xlane.xlu0 %298
        %v300 = vadd.f32 %v230, %v231
        %v301 = vadd.f32 %v300, %v232
        %v302 = vadd.f32 %v301, %v233
        %303 = vadd.xlane.f32.xlu0 %v302
        %v304 = vpop.xlane.xlu0 %303
        %v305 = vadd.f32 %v234, %v235
        %v306 = vadd.f32 %v305, %v236
        %v307 = vadd.f32 %v306, %v237
        %308 = vadd.xlane.f32.xlu0 %v307
        %v309 = vpop.xlane.xlu0 %308
        %v310 = vadd.f32 %v238, %v239
        %v311 = vadd.f32 %v310, %v240
        %v312 = vadd.f32 %v311, %v241
        %313 = vadd.xlane.f32.xlu0 %v312
        %v314 = vpop.xlane.xlu0 %313
        %v315 = vadd.f32 %v242, %v243
        %v316 = vadd.f32 %v315, %v244
        %v317 = vadd.f32 %v316, %v245
        %318 = vadd.xlane.f32.xlu0 %v317
        %v319 = vpop.xlane.xlu0 %318
        %v320 = vadd.f32 %v246, %v247
        %v321 = vadd.f32 %v320, %v248
        %v322 = vadd.f32 %v321, %v249
        %323 = vadd.xlane.f32.xlu0 %v322
        %v324 = vpop.xlane.xlu0 %323
        %v325 = vadd.f32 %v250, %v251
        %v326 = vadd.f32 %v325, %v252
        %v327 = vadd.f32 %v326, %v253
        %328 = vadd.xlane.f32.xlu0 %v327
        %v329 = vpop.xlane.xlu0 %328
        %v330 = vadd.f32 %v254, %v255
        %v331 = vadd.f32 %v330, %v256
        %v332 = vadd.f32 %v331, %v257
        %333 = vadd.xlane.f32.xlu0 %v332
        %v334 = vpop.xlane.xlu0 %333
        %v335 = vadd.f32 %v258, %v259
        %v336 = vadd.f32 %v335, %v260
        %v337 = vadd.f32 %v336, %v261
        %338 = vadd.xlane.f32.xlu0 %v337
        %v339 = vpop.xlane.xlu0 %338
        %v340 = vadd.f32 %v262, %v263
        %v341 = vadd.f32 %v340, %v264
        %v342 = vadd.f32 %v341, %v265
        %343 = vadd.xlane.f32.xlu0 %v342
        %v344 = vpop.xlane.xlu0 %343
        %v345 = vadd.f32 %v266, %v267
        %v346 = vadd.f32 %v345, %v268
        %v347 = vadd.f32 %v346, %v269
        %348 = vadd.xlane.f32.xlu0 %v347
        %v349 = vpop.xlane.xlu0 %348
        %v350 = vrcp.pop 512.0
        %v351 = vmul.f32 512.0, %v350
        %v352 = vsub.f32 1.0, %v351
        %v353 = vmul.f32 %v350, %v352
        %v354 = vadd.f32 %v350, %v353
        %vm355 = vweird.f32 %v350
        %v356 = vsel %vm355, %v350, %v354
        %v357 = vmul.f32 %v274, %v356
        %v358 = vmul.f32 %v279, %v356
        %v359 = vmul.f32 %v284, %v356
        %v360 = vmul.f32 %v289, %v356
        %v361 = vmul.f32 %v294, %v356
        %v362 = vmul.f32 %v299, %v356
        %v363 = vmul.f32 %v304, %v356
        %v364 = vmul.f32 %v309, %v356
        %v365 = vmul.f32 %v314, %v356
        %v366 = vmul.f32 %v319, %v356
        %v367 = vmul.f32 %v324, %v356
        %v368 = vmul.f32 %v329, %v356
        %v369 = vmul.f32 %v334, %v356
        %v370 = vmul.f32 %v339, %v356
        %v371 = vmul.f32 %v344, %v356
        %v372 = vmul.f32 %v349, %v356
        %v373 = vadd.f32 %v357, 1e-06
        %v374 = vadd.f32 %v358, 1e-06
        %v375 = vadd.f32 %v359, 1e-06
        %v376 = vadd.f32 %v360, 1e-06
        %v377 = vadd.f32 %v361, 1e-06
        %v378 = vadd.f32 %v362, 1e-06
        %v379 = vadd.f32 %v363, 1e-06
        %v380 = vadd.f32 %v364, 1e-06
        %v381 = vadd.f32 %v365, 1e-06
        %v382 = vadd.f32 %v366, 1e-06
        %v383 = vadd.f32 %v367, 1e-06
        %v384 = vadd.f32 %v368, 1e-06
        %v385 = vadd.f32 %v369, 1e-06
        %v386 = vadd.f32 %v370, 1e-06
        %v387 = vadd.f32 %v371, 1e-06
        %v388 = vadd.f32 %v372, 1e-06
        %v389 = vrsqrt.pop %v373
        %v390 = vmul.f32 %v389, %v373
        %v391 = vmul.f32 %v390, %v389
        %v392 = vmul.f32 0.5, %v391
        %v393 = vsub.f32 1.5, %v392
        %v394 = vmul.f32 %v389, %v393
        %vm395 = vweird.f32 %v373
        %vm396 = vweird.f32 %v389
        %vm397 = vmor %vm395, %vm396
        %v398 = vsel %vm397, %v389, %v394
        %v399 = vrsqrt.pop %v374
        %v400 = vmul.f32 %v399, %v374
        %v401 = vmul.f32 %v400, %v399
        %v402 = vmul.f32 0.5, %v401
        %v403 = vsub.f32 1.5, %v402
        %v404 = vmul.f32 %v399, %v403
        %vm405 = vweird.f32 %v374
        %vm406 = vweird.f32 %v399
        %vm407 = vmor %vm405, %vm406
        %v408 = vsel %vm407, %v399, %v404
        %v409 = vrsqrt.pop %v375
        %v410 = vmul.f32 %v409, %v375
        %v411 = vmul.f32 %v410, %v409
        %v412 = vmul.f32 0.5, %v411
        %v413 = vsub.f32 1.5, %v412
        %v414 = vmul.f32 %v409, %v413
        %vm415 = vweird.f32 %v375
        %vm416 = vweird.f32 %v409
        %vm417 = vmor %vm415, %vm416
        %v418 = vsel %vm417, %v409, %v414
        %v419 = vrsqrt.pop %v376
        %v420 = vmul.f32 %v419, %v376
        %v421 = vmul.f32 %v420, %v419
        %v422 = vmul.f32 0.5, %v421
        %v423 = vsub.f32 1.5, %v422
        %v424 = vmul.f32 %v419, %v423
        %vm425 = vweird.f32 %v376
        %vm426 = vweird.f32 %v419
        %vm427 = vmor %vm425, %vm426
        %v428 = vsel %vm427, %v419, %v424
        %v429 = vrsqrt.pop %v377
        %v430 = vmul.f32 %v429, %v377
        %v431 = vmul.f32 %v430, %v429
        %v432 = vmul.f32 0.5, %v431
        %v433 = vsub.f32 1.5, %v432
        %v434 = vmul.f32 %v429, %v433
        %vm435 = vweird.f32 %v377
        %vm436 = vweird.f32 %v429
        %vm437 = vmor %vm435, %vm436
        %v438 = vsel %vm437, %v429, %v434
        %v439 = vrsqrt.pop %v378
        %v440 = vmul.f32 %v439, %v378
        %v441 = vmul.f32 %v440, %v439
        %v442 = vmul.f32 0.5, %v441
        %v443 = vsub.f32 1.5, %v442
        %v444 = vmul.f32 %v439, %v443
        %vm445 = vweird.f32 %v378
        %vm446 = vweird.f32 %v439
        %vm447 = vmor %vm445, %vm446
        %v448 = vsel %vm447, %v439, %v444
        %v449 = vrsqrt.pop %v379
        %v450 = vmul.f32 %v449, %v379
        %v451 = vmul.f32 %v450, %v449
        %v452 = vmul.f32 0.5, %v451
        %v453 = vsub.f32 1.5, %v452
        %v454 = vmul.f32 %v449, %v453
        %vm455 = vweird.f32 %v379
        %vm456 = vweird.f32 %v449
        %vm457 = vmor %vm455, %vm456
        %v458 = vsel %vm457, %v449, %v454
        %v459 = vrsqrt.pop %v380
        %v460 = vmul.f32 %v459, %v380
        %v461 = vmul.f32 %v460, %v459
        %v462 = vmul.f32 0.5, %v461
        %v463 = vsub.f32 1.5, %v462
        %v464 = vmul.f32 %v459, %v463
        %vm465 = vweird.f32 %v380
        %vm466 = vweird.f32 %v459
        %vm467 = vmor %vm465, %vm466
        %v468 = vsel %vm467, %v459, %v464
        %v469 = vrsqrt.pop %v381
        %v470 = vmul.f32 %v469, %v381
        %v471 = vmul.f32 %v470, %v469
        %v472 = vmul.f32 0.5, %v471
        %v473 = vsub.f32 1.5, %v472
        %v474 = vmul.f32 %v469, %v473
        %vm475 = vweird.f32 %v381
        %vm476 = vweird.f32 %v469
        %vm477 = vmor %vm475, %vm476
        %v478 = vsel %vm477, %v469, %v474
        %v479 = vrsqrt.pop %v382
        %v480 = vmul.f32 %v479, %v382
        %v481 = vmul.f32 %v480, %v479
        %v482 = vmul.f32 0.5, %v481
        %v483 = vsub.f32 1.5, %v482
        %v484 = vmul.f32 %v479, %v483
        %vm485 = vweird.f32 %v382
        %vm486 = vweird.f32 %v479
        %vm487 = vmor %vm485, %vm486
        %v488 = vsel %vm487, %v479, %v484
        %v489 = vrsqrt.pop %v383
        %v490 = vmul.f32 %v489, %v383
        %v491 = vmul.f32 %v490, %v489
        %v492 = vmul.f32 0.5, %v491
        %v493 = vsub.f32 1.5, %v492
        %v494 = vmul.f32 %v489, %v493
        %vm495 = vweird.f32 %v383
        %vm496 = vweird.f32 %v489
        %vm497 = vmor %vm495, %vm496
        %v498 = vsel %vm497, %v489, %v494
        %v499 = vrsqrt.pop %v384
        %v500 = vmul.f32 %v499, %v384
        %v501 = vmul.f32 %v500, %v499
        %v502 = vmul.f32 0.5, %v501
        %v503 = vsub.f32 1.5, %v502
        %v504 = vmul.f32 %v499, %v503
        %vm505 = vweird.f32 %v384
        %vm506 = vweird.f32 %v499
        %vm507 = vmor %vm505, %vm506
        %v508 = vsel %vm507, %v499, %v504
        %v509 = vrsqrt.pop %v385
        %v510 = vmul.f32 %v509, %v385
        %v511 = vmul.f32 %v510, %v509
        %v512 = vmul.f32 0.5, %v511
        %v513 = vsub.f32 1.5, %v512
        %v514 = vmul.f32 %v509, %v513
        %vm515 = vweird.f32 %v385
        %vm516 = vweird.f32 %v509
        %vm517 = vmor %vm515, %vm516
        %v518 = vsel %vm517, %v509, %v514
        %v519 = vrsqrt.pop %v386
        %v520 = vmul.f32 %v519, %v386
        %v521 = vmul.f32 %v520, %v519
        %v522 = vmul.f32 0.5, %v521
        %v523 = vsub.f32 1.5, %v522
        %v524 = vmul.f32 %v519, %v523
        %vm525 = vweird.f32 %v386
        %vm526 = vweird.f32 %v519
        %vm527 = vmor %vm525, %vm526
        %v528 = vsel %vm527, %v519, %v524
        %v529 = vrsqrt.pop %v387
        %v530 = vmul.f32 %v529, %v387
        %v531 = vmul.f32 %v530, %v529
        %v532 = vmul.f32 0.5, %v531
        %v533 = vsub.f32 1.5, %v532
        %v534 = vmul.f32 %v529, %v533
        %vm535 = vweird.f32 %v387
        %vm536 = vweird.f32 %v529
        %vm537 = vmor %vm535, %vm536
        %v538 = vsel %vm537, %v529, %v534
        %v539 = vrsqrt.pop %v388
        %v540 = vmul.f32 %v539, %v388
        %v541 = vmul.f32 %v540, %v539
        %v542 = vmul.f32 0.5, %v541
        %v543 = vsub.f32 1.5, %v542
        %v544 = vmul.f32 %v539, %v543
        %vm545 = vweird.f32 %v388
        %vm546 = vweird.f32 %v539
        %vm547 = vmor %vm545, %vm546
        %v548 = vsel %vm547, %v539, %v544
        %vm549 = vcmask 7168
        %550 = vst.msk [vmem:[%s140] sm:$0xff] %vm549, %v398
        %551 = vst.msk [vmem:[%s140 + $0x8] sm:$0xff] %vm549, %v408
        %552 = vst.msk [vmem:[%s140 + $0x10] sm:$0xff] %vm549, %v418
        %553 = vst.msk [vmem:[%s140 + $0x18] sm:$0xff] %vm549, %v428
        %554 = vst.msk [vmem:[%s140 + $0x20] sm:$0xff] %vm549, %v438
        %555 = vst.msk [vmem:[%s140 + $0x28] sm:$0xff] %vm549, %v448
        %556 = vst.msk [vmem:[%s140 + $0x30] sm:$0xff] %vm549, %v458
        %557 = vst.msk [vmem:[%s140 + $0x38] sm:$0xff] %vm549, %v468
        %558 = vst.msk [vmem:[%s140 + $0x40] sm:$0xff] %vm549, %v478
        %559 = vst.msk [vmem:[%s140 + $0x48] sm:$0xff] %vm549, %v488
        %560 = vst.msk [vmem:[%s140 + $0x50] sm:$0xff] %vm549, %v498
        %561 = vst.msk [vmem:[%s140 + $0x58] sm:$0xff] %vm549, %v508
        %562 = vst.msk [vmem:[%s140 + $0x60] sm:$0xff] %vm549, %v518
        %563 = vst.msk [vmem:[%s140 + $0x68] sm:$0xff] %vm549, %v528
        %564 = vst.msk [vmem:[%s140 + $0x70] sm:$0xff] %vm549, %v538
        %565 = vst.msk [vmem:[%s140 + $0x78] sm:$0xff] %vm549, %v548
        %s566 = smul.u32 16, %s15
        %p567 = scmp.lt.s32.totalorder %s566, 31
        %s568 = scalar_select %p567, %s566, 31
        %s569 = smul.addr %s568, 8
        %s570 = scalar_lea.vmem %s1, %s569
        // Predicated region
        $region29: #{tpu_custom_call.1} parent=23 // pred_check
          %p571 = pneg %p59
        $region30: #{tpu_custom_call.1} parent=23 // pred_check_branch
          %573 = sbr.rel (%p571) target = $region32
        $region31: #{tpu_custom_call.1} parent=23 // pred_region
          %s574 = smul.u32 16, %s15
        $region32: #{tpu_custom_call.1} parent=23 // pred_fallthru
          _
      $region24: #{tpu_custom_call.1} parent=5 // pred_fallthru
        _
      %p575 = scmp.le.s32.totalorder 2, %s10
      // Predicated region
      $region33: #{tpu_custom_call.1} parent=5 // pred_check
        %p576 = pneg %p575
      $region34: #{tpu_custom_call.1} parent=5 // pred_check_branch
        %578 = sbr.rel (%p576) target = $region36
      $region35: #{tpu_custom_call.1} parent=5 // pred_region
        %s579 = ssub.s32 %s10, 2
        // Predicated region
        $region37: #{tpu_custom_call.1} parent=35 // pred_check
          %p580 = pneg %p65
        $region38: #{tpu_custom_call.1} parent=35 // pred_check_branch
          %582 = sbr.rel (%p580) target = $region40
        $region39: #{tpu_custom_call.1} parent=35 // pred_region
          %s583 = smul.u32 16, %s16
          %p584 = scmp.lt.s32.totalorder %s583, 31
          %s585 = scalar_select %p584, %s583, 31
          %s586 = smul.addr %s585, 8
          %s587 = scalar_lea.vmem %s1, %s586
        $region40: #{tpu_custom_call.1} parent=35 // pred_fallthru
          _
      $region36: #{tpu_custom_call.1} parent=5 // pred_fallthru
        _
    $region6: #{tpu_custom_call.1} parent=1 // loop_footer
      %s14 = sadd.s32 1, %s10
    $region7: #{tpu_custom_call.1} parent=1 // loop_footer_branch
      %9 = sbr.rel target = $region3
    $region8: #{tpu_custom_call.1} parent=1 // loop_exit
      _
    %588 = vsyncpa [#allocation3], 1
    %s589 = scalar_lea.sflag [#allocation3], 1
    %590 = vsyncpa %s589, 1

</llo_original>
